<compile_context>
chip_gen: v7x
topology: tpu7x:2x2x1
jax: 0.10.0
libtpu: 0.0.40
codegen_flags: <defaults>
</compile_context>

<pallas_src>
import functools

import jax
import jax.numpy as jnp
from jax import lax
from jax.experimental import pallas as pl
from jax.experimental.pallas import tpu as pltpu


def _round_up(a, m):
    return ((a + m - 1) // m) * m


def c_net_kernel(x_ref, w1_ref, b1_ref, w2_ref, b2_ref, w3_ref, b3_ref, o_ref):
    cdt = w1_ref.dtype                         # MXU operand dtype (bf16 or f32)

    # Layer 1: Linear + ReLU (MXU matmul, f32 accumulate; bias + ReLU in f32 on VPU)
    x = x_ref[...].astype(cdt)
    h1 = jnp.dot(x, w1_ref[...], preferred_element_type=jnp.float32)
    h1 = jnp.maximum(h1 + b1_ref[...], 0.0)

    # Layer 2: Linear + ReLU
    h2 = jnp.dot(h1.astype(cdt), w2_ref[...], preferred_element_type=jnp.float32)
    h2 = jnp.maximum(h2 + b2_ref[...], 0.0)

    # Layer 3 (value head): contract h2's lane dim against the padded (8, Wp) w3
    # rows -> (8, TB); row 0 is the real head output, already lane-dense.
    v = lax.dot_general(w3_ref[...], h2.astype(cdt),
                        dimension_numbers=(((1,), (1,)), ((), ())),
                        preferred_element_type=jnp.float32)
    o_ref[...] = (v[0:1, :] + b3_ref[0, 0]).astype(o_ref.dtype)


def prepare_c_net_params(params, compute_dtype=jnp.bfloat16):
    """One-time weight prep: zero-pad hidden width to 128 lanes, cast MXU operands.

    Call once per parameter update, NOT per forward pass.
    """
    w1, b1, w2, b2, w3, b3 = params
    f32 = jnp.float32
    in_dim, W = w1.shape
    Wp = _round_up(W, 128)

    w1p = jnp.zeros((in_dim, Wp), compute_dtype).at[:, :W].set(w1.astype(compute_dtype))
    b1p = jnp.zeros((1, Wp), f32).at[:, :W].set(jnp.asarray(b1, f32).reshape(1, W))
    w2p = jnp.zeros((Wp, Wp), compute_dtype).at[:W, :W].set(w2.astype(compute_dtype))
    b2p = jnp.zeros((1, Wp), f32).at[:, :W].set(jnp.asarray(b2, f32).reshape(1, W))
    # w3 padded to 8 sublane rows (row 0 = real head) so the head matmul avoids M=1.
    w3p = jnp.zeros((8, Wp), compute_dtype).at[0, :W].set(
        jnp.asarray(w3, compute_dtype).reshape(W))
    b3p = jnp.asarray(b3, f32).reshape(1, 1)
    return (w1p, b1p, w2p, b2p, w3p, b3p)


@functools.partial(jax.jit, static_argnames=("block_batch",))
def c_net_forward(x, prepared_params, *, block_batch=2048):
    """Critic MLP forward.  `prepared_params` comes from prepare_c_net_params()."""
    w1p, b1p, w2p, b2p, w3p, b3p = prepared_params
    B, in_dim = x.shape
    Wp = w1p.shape[1]
    f32 = jnp.float32

    # ---- batch tiling (no wrapper-side zero-pad copy of x) ----
    if B <= 256:
        tb = B                                        # single tile: blocks == full arrays
    else:
        n_tiles = max(2, pl.cdiv(B, block_batch))     # >=2 tiles -> v7x dual-TC sharding
        tb = min(_round_up(pl.cdiv(B, n_tiles), 128), _round_up(B, 128))
    num_tiles = pl.cdiv(B, tb)

    resident = lambda shape: pl.BlockSpec(shape, lambda i: (0, 0))
    nbytes = lambda a: int(a.size) * a.dtype.itemsize

    cost = pl.CostEstimate(
        # Executed (lane-padded) MACs: Wp is what the MXU actually runs.
        flops=2 * B * (in_dim * Wp + Wp * Wp + Wp),
        transcendentals=0,
        bytes_accessed=(nbytes(x) + B * 4
                        + sum(nbytes(a) for a in (w1p, b1p, w2p, b2p, w3p, b3p))),
    )

    out = pl.pallas_call(
        c_net_kernel,
        out_shape=jax.ShapeDtypeStruct((1, B), f32),
        grid=(num_tiles,),
        in_specs=[
            pl.BlockSpec((tb, in_dim), lambda i: (i, 0)),        # x: tiled over batch
            resident((in_dim, Wp)),                              # w1 (VMEM-resident)
            resident((1, Wp)),                                   # b1
            resident((Wp, Wp)),                                  # w2
            resident((1, Wp)),                                   # b2
            resident((8, Wp)),                                   # w3 (padded rows)
            pl.BlockSpec(memory_space=pltpu.MemorySpace.SMEM),   # b3 scalar in SMEM
        ],
        out_specs=pl.BlockSpec((1, tb), lambda i: (0, i)),       # lane-dense output row
        compiler_params=pltpu.CompilerParams(
            dimension_semantics=("parallel",)),                  # v7x dual-TC sharding
        cost_estimate=cost,
    )(x, w1p, b1p, w2p, b2p, w3p, b3p)

    return out.reshape(B, 1)


def init_c_net_params(key, input_dim, net_width):
    """Deterministic init mimicking torch.nn.Linear's U(-1/sqrt(fan_in), +) scheme."""
    ks = jax.random.split(key, 6)

    def linear(kw, kb, fan_in, fan_out):
        bound = 1.0 / jnp.sqrt(jnp.float32(fan_in))
        w = jax.random.uniform(kw, (fan_in, fan_out), jnp.float32, -bound, bound)
        b = jax.random.uniform(kb, (1, fan_out), jnp.float32, -bound, bound)
        return w, b

    w1, b1 = linear(ks[0], ks[1], input_dim, net_width)
    w2, b2 = linear(ks[2], ks[3], net_width, net_width)
    w3, b3 = linear(ks[4], ks[5], net_width, 1)
    return (w1, b1, w2, b2, w3, b3)


def c_net_reference(x, params):
    """Pure-JAX reference of the PyTorch forward, for verification."""
    w1, b1, w2, b2, w3, b3 = params
    h = jnp.maximum(x @ w1 + b1, 0.0)
    h = jnp.maximum(h @ w2 + b2, 0.0)
    return h @ w3 + b3


if __name__ == "__main__":
    key = jax.random.PRNGKey(0)
    k_x, k_p = jax.random.split(key)

    batch = 8
    input_dim = 16     # state dimension "Input"
    net_width = 32     # hidden width "net_width"

    x = jax.random.normal(k_x, (batch, input_dim), dtype=jnp.float32)
    params = init_c_net_params(k_p, input_dim, net_width)
    v_ref = c_net_reference(x, params)

    # Exact f32 compute path, tiny batch (single full-array tile, masked lanes OK).
    prep_f32 = prepare_c_net_params(params, compute_dtype=jnp.float32)
    v = c_net_forward(x, prep_f32)
    jax.block_until_ready(v)
    assert v.shape == (batch, 1)
    assert jnp.allclose(v, v_ref, atol=5e-3, rtol=5e-3)

    # Larger batch: multi-tile grid, ragged tail handled by partial blocks, f32 path.
    x_big = jax.random.normal(jax.random.PRNGKey(1), (1000, input_dim), jnp.float32)
    v_big_ref = c_net_reference(x_big, params)
    v_big_f32 = c_net_forward(x_big, prep_f32)
    jax.block_until_ready(v_big_f32)
    assert v_big_f32.shape == (1000, 1)
    assert jnp.allclose(v_big_f32, v_big_ref, atol=5e-3, rtol=5e-3)

    # Default bf16 MXU-operand path (f32 accumulation); looser tolerance because the
    # layer-1 activation is also quantized to bf16 before layer 2.
    prep_bf16 = prepare_c_net_params(params)       # bf16 by default
    v_big_bf16 = c_net_forward(x_big, prep_bf16)
    jax.block_until_ready(v_big_bf16)
    assert v_big_bf16.shape == (1000, 1)
    assert jnp.allclose(v_big_bf16, v_big_ref, atol=1e-1, rtol=1e-1)

    print("KERNEL_OK")
</pallas_src>

<mosaic_0001>
module attributes {stable_mosaic.version = 11 : i64} {
  func.func @c_net_kernel(%arg0: i32, %arg1: memref<8x16xf32, #tpu.memory_space<vmem>>, %arg2: memref<16x128xf32, #tpu.memory_space<vmem>>, %arg3: memref<1x128xf32, #tpu.memory_space<vmem>>, %arg4: memref<128x128xf32, #tpu.memory_space<vmem>>, %arg5: memref<1x128xf32, #tpu.memory_space<vmem>>, %arg6: memref<8x128xf32, #tpu.memory_space<vmem>>, %arg7: memref<1x1xf32, #tpu.memory_space<smem>>, %arg8: memref<1x8xf32, #tpu.memory_space<vmem>>) attributes {dimension_semantics = [#tpu.dimension_semantics<parallel>], iteration_bounds = array<i64: 1>, scalar_prefetch = 0 : i64, scratch_operands = 0 : i64, tpu.core_type = #tpu.core_type<tc>, window_params = [{transform_indices = @transform_0, window_bounds = array<i64: 8, 16>}, {pipeline_mode = #tpu.pipeline_mode<synchronous>, transform_indices = @transform_1, window_bounds = array<i64: 16, 128>}, {pipeline_mode = #tpu.pipeline_mode<synchronous>, transform_indices = @transform_2, window_bounds = array<i64: 1, 128>}, {pipeline_mode = #tpu.pipeline_mode<synchronous>, transform_indices = @transform_3, window_bounds = array<i64: 128, 128>}, {pipeline_mode = #tpu.pipeline_mode<synchronous>, transform_indices = @transform_4, window_bounds = array<i64: 1, 128>}, {pipeline_mode = #tpu.pipeline_mode<synchronous>, transform_indices = @transform_5, window_bounds = array<i64: 8, 128>}, {transform_indices = @transform_6, window_bounds = array<i64: 1, 1>}, {transform_indices = @transform_7, window_bounds = array<i64: 1, 8>}]} {
    %c0 = arith.constant 0 : index
    %c0_0 = arith.constant 0 : index
    %0 = vector.load %arg1[%c0, %c0_0] : memref<8x16xf32, #tpu.memory_space<vmem>>, vector<8x16xf32>
    %c0_1 = arith.constant 0 : index
    %c0_2 = arith.constant 0 : index
    %1 = vector.load %arg2[%c0_1, %c0_2] : memref<16x128xf32, #tpu.memory_space<vmem>>, vector<16x128xf32>
    %cst = arith.constant dense<0.000000e+00> : vector<8x128xf32>
    %2 = tpu.matmul %0, %1, %cst {dimension_numbers = #tpu.dot_dimension_numbers<[1], [0], [0], [1], [0, 0, 1, 1], [], []>} : vector<8x16xf32>, vector<16x128xf32>, vector<8x128xf32> -> vector<8x128xf32>
    %c0_3 = arith.constant 0 : index
    %c0_4 = arith.constant 0 : index
    %3 = vector.load %arg3[%c0_3, %c0_4] : memref<1x128xf32, #tpu.memory_space<vmem>>, vector<1x128xf32>
    %4 = vector.broadcast %3 : vector<1x128xf32> to vector<8x128xf32>
    %5 = arith.addf %2, %4 : vector<8x128xf32>
    %cst_5 = arith.constant 0.000000e+00 : f32
    %6 = vector.broadcast %cst_5 : f32 to vector<8x128xf32>
    %7 = arith.maximumf %5, %6 : vector<8x128xf32>
    %c0_6 = arith.constant 0 : index
    %c0_7 = arith.constant 0 : index
    %8 = vector.load %arg4[%c0_6, %c0_7] : memref<128x128xf32, #tpu.memory_space<vmem>>, vector<128x128xf32>
    %cst_8 = arith.constant dense<0.000000e+00> : vector<8x128xf32>
    %9 = tpu.matmul %7, %8, %cst_8 {dimension_numbers = #tpu.dot_dimension_numbers<[1], [0], [0], [1], [0, 0, 1, 1], [], []>} : vector<8x128xf32>, vector<128x128xf32>, vector<8x128xf32> -> vector<8x128xf32>
    %c0_9 = arith.constant 0 : index
    %c0_10 = arith.constant 0 : index
    %10 = vector.load %arg5[%c0_9, %c0_10] : memref<1x128xf32, #tpu.memory_space<vmem>>, vector<1x128xf32>
    %11 = vector.broadcast %10 : vector<1x128xf32> to vector<8x128xf32>
    %12 = arith.addf %9, %11 : vector<8x128xf32>
    %cst_11 = arith.constant 0.000000e+00 : f32
    %13 = vector.broadcast %cst_11 : f32 to vector<8x128xf32>
    %14 = arith.maximumf %12, %13 : vector<8x128xf32>
    %c0_12 = arith.constant 0 : index
    %c0_13 = arith.constant 0 : index
    %15 = vector.load %arg6[%c0_12, %c0_13] : memref<8x128xf32, #tpu.memory_space<vmem>>, vector<8x128xf32>
    %cst_14 = arith.constant dense<0.000000e+00> : vector<8x8xf32>
    %16 = tpu.matmul %15, %14, %cst_14 {dimension_numbers = #tpu.dot_dimension_numbers<[1], [1], [0], [0], [0, 0, 1, 0], [], []>} : vector<8x128xf32>, vector<8x128xf32>, vector<8x8xf32> -> vector<8x8xf32>
    %17 = vector.extract_strided_slice %16 {offsets = [0, 0], sizes = [1, 8], strides = [1, 1]} : vector<8x8xf32> to vector<1x8xf32>
    %c0_15 = arith.constant 0 : index
    %c0_16 = arith.constant 0 : index
    %18 = memref.load %arg7[%c0_15, %c0_16] : memref<1x1xf32, #tpu.memory_space<smem>>
    %19 = vector.broadcast %18 : f32 to vector<1x8xf32>
    %20 = arith.addf %17, %19 : vector<1x8xf32>
    %c0_17 = arith.constant 0 : index
    %c0_18 = arith.constant 0 : index
    %21 = vector.load %arg8[%c0_17, %c0_18] : memref<1x8xf32, #tpu.memory_space<vmem>>, vector<1x8xf32>
    tpu.vector_store %arg8[%c0_17, %c0_18], %20 {strides = array<i32>} : memref<1x8xf32, #tpu.memory_space<vmem>>, vector<1x8xf32>,
    return
  }
  func.func @transform_0(%arg0: i32) -> (i32, i32) {
    %c0_i32 = arith.constant 0 : i32
    %c0_i32_0 = arith.constant 0 : i32
    return %arg0, %c0_i32 : i32, i32
  }
  func.func @transform_1(%arg0: i32) -> (i32, i32) {
    %c0_i32 = arith.constant 0 : i32
    %c0_i32_0 = arith.constant 0 : i32
    %c0_i32_1 = arith.constant 0 : i32
    return %c0_i32, %c0_i32_0 : i32, i32
  }
  func.func @transform_2(%arg0: i32) -> (i32, i32) {
    %c0_i32 = arith.constant 0 : i32
    %c0_i32_0 = arith.constant 0 : i32
    %c0_i32_1 = arith.constant 0 : i32
    return %c0_i32, %c0_i32_0 : i32, i32
  }
  func.func @transform_3(%arg0: i32) -> (i32, i32) {
    %c0_i32 = arith.constant 0 : i32
    %c0_i32_0 = arith.constant 0 : i32
    %c0_i32_1 = arith.constant 0 : i32
    return %c0_i32, %c0_i32_0 : i32, i32
  }
  func.func @transform_4(%arg0: i32) -> (i32, i32) {
    %c0_i32 = arith.constant 0 : i32
    %c0_i32_0 = arith.constant 0 : i32
    %c0_i32_1 = arith.constant 0 : i32
    return %c0_i32, %c0_i32_0 : i32, i32
  }
  func.func @transform_5(%arg0: i32) -> (i32, i32) {
    %c0_i32 = arith.constant 0 : i32
    %c0_i32_0 = arith.constant 0 : i32
    %c0_i32_1 = arith.constant 0 : i32
    return %c0_i32, %c0_i32_0 : i32, i32
  }
  func.func @transform_6(%arg0: i32) -> (i32, i32) {
    %c0_i32 = arith.constant 0 : i32
    %c0_i32_0 = arith.constant 0 : i32
    %c0_i32_1 = arith.constant 0 : i32
    return %c0_i32, %c0_i32_0 : i32, i32
  }
  func.func @transform_7(%arg0: i32) -> (i32, i32) {
    %c0_i32 = arith.constant 0 : i32
    %c0_i32_0 = arith.constant 0 : i32
    return %c0_i32, %arg0 : i32, i32
  }
}

</mosaic_0001>

<llo_original>
// kernel: c_net_forward.1
$region0: #{c_net_forward.1}
  #allocation0 [shape = 'u32[]', space=smem, size = 0x4, offset = 0x4, fixed_abs, tag = 'smem constant byte address 0x4 - core index']
  #allocation1 [shape = 'u32[144,128]{1,0:T(1,128)}', space=vmem, size = 0x12000, scoped, tag = 'internal scratch']
  #allocation2 [shape = 'f32[1,1]{1,0:T(1,128)S(6)}', space=smem, size = 0x200, scoped, tag = 'scoped memory for c_net_forward.1']
  %s0 = inlined_call_operand.hbm [shape: f32[8,16], index: 0, kind: input, shape index: {}]
  %s1 = inlined_call_operand.hbm [shape: f32[16,128], index: 1, kind: input, shape index: {}]
  %s2 = inlined_call_operand.vmem [shape: f32[1,128], index: 2, kind: input, shape index: {}]
  %s3 = inlined_call_operand.hbm [shape: f32[128,128], index: 3, kind: input, shape index: {}]
  %s4 = inlined_call_operand.vmem [shape: f32[1,128], index: 4, kind: input, shape index: {}]
  %s5 = inlined_call_operand.vmem [shape: f32[8,128], index: 5, kind: input, shape index: {}]
  %s6 = inlined_call_operand.<no memory space> [shape: f32[1,1], index: 6, kind: input, shape index: {}]
  %s7 = inlined_call_operand.hbm [shape: f32[1,8], index: 7, kind: output, shape index: {}]
  %s8 = sld [smem:[#allocation0]]
  $region50: #{c_net_forward.1} parent=0
    _
  %s10 = ssub.s32 1, %s8
  %s11 = scalar_select 0, %s10, %s8
  %12 = sst [smem:[#allocation2]] %s6
  $region1: #{c_net_forward.1} parent=0
    #allocation3 [shape = 'u8[4096]{0}', space=vmem, size = 0x1000, scoped, tag = 'input window, operand 0, single buffered']
    #allocation4 [shape = 's32[1]{0}', space=sflag, size = 0x4, scoped, tag = 'scoped memory for c_net_forward.1']
    #allocation5 [shape = 's32[1]{0}', space=sflag, size = 0x4, scoped, tag = 'scoped memory for c_net_forward.1']
    #allocation6 [shape = 'u8[8192]{0}', space=vmem, size = 0x2000, scoped, tag = 'input window, operand 1, single buffered']
    #allocation7 [shape = 's32[1]{0}', space=sflag, size = 0x4, scoped, tag = 'scoped memory for c_net_forward.1']
    #allocation8 [shape = 'u8[65536]{0}', space=vmem, size = 0x10000, scoped, tag = 'input window, operand 3, single buffered']
    #allocation9 [shape = 'u8[512]{0}', space=vmem, size = 0x400, scoped, tag = 'output window, operand 0, single buffered']
    %13 = vsyncpa [#allocation4], 0
    %14 = vsyncpa [#allocation7], 0
    %15 = vsyncpa [#allocation5], 0
    // Predicated region
    $region2: #{c_net_forward.1} parent=1 // pred_check
      _
    $region3: #{c_net_forward.1} parent=1 // pred_check_branch
      %17 = sbr.rel (0) target = $region5
    $region4: #{c_net_forward.1} parent=1 // pred_region
      %s19 = ssub.s32 128, 128
      %20 = vsyncadd [#allocation4], %s19
      %s22 = sshll.u32 [#allocation3], 4
      %s23 = int_to_ptr.vmem [resolvable:$true] %s22
      %25 = dma.hbm_to_vmem [thread:$0]  %s0, 128, %s23, [#allocation4]
    $region5: #{c_net_forward.1} parent=1 // pred_fallthru
      _
    // Predicated region
    $region6: #{c_net_forward.1} parent=1 // pred_check
      _
    $region7: #{c_net_forward.1} parent=1 // pred_check_branch
      %27 = sbr.rel (0) target = $region9
    $region8: #{c_net_forward.1} parent=1 // pred_region
      %s29 = ssub.s32 256, 256
      %30 = vsyncadd [#allocation7], %s29
      %s31 = sshll.u32 [#allocation6], 4
      %s32 = int_to_ptr.vmem [resolvable:$true] %s31
      %37 = dma.hbm_to_vmem [thread:$0]  %s1, 256, %s32, [#allocation7], 128, 128, 8
    $region9: #{c_net_forward.1} parent=1 // pred_fallthru
      _
    // Predicated region
    $region10: #{c_net_forward.1} parent=1 // pred_check
      _
    $region11: #{c_net_forward.1} parent=1 // pred_check_branch
      %39 = sbr.rel (0) target = $region13
    $region12: #{c_net_forward.1} parent=1 // pred_region
      _
    $region13: #{c_net_forward.1} parent=1 // pred_fallthru
      _
    // Predicated region
    $region14: #{c_net_forward.1} parent=1 // pred_check
      _
    $region15: #{c_net_forward.1} parent=1 // pred_check_branch
      %41 = sbr.rel (0) target = $region17
    $region16: #{c_net_forward.1} parent=1 // pred_region
      %s43 = ssub.s32 2048, 2048
      %44 = vsyncadd [#allocation7], %s43
      %s45 = sshll.u32 [#allocation8], 4
      %s46 = int_to_ptr.vmem [resolvable:$true] %s45
      %51 = dma.hbm_to_vmem [thread:$0]  %s3, 2048, %s46, [#allocation7], 128, 128, 8
    $region17: #{c_net_forward.1} parent=1 // pred_fallthru
      _
    // Predicated region
    $region18: #{c_net_forward.1} parent=1 // pred_check
      _
    $region19: #{c_net_forward.1} parent=1 // pred_check_branch
      %53 = sbr.rel (0) target = $region21
    $region20: #{c_net_forward.1} parent=1 // pred_region
      _
    $region21: #{c_net_forward.1} parent=1 // pred_fallthru
      _
    // Predicated region
    $region22: #{c_net_forward.1} parent=1 // pred_check
      _
    $region23: #{c_net_forward.1} parent=1 // pred_check_branch
      %55 = sbr.rel (0) target = $region25
    $region24: #{c_net_forward.1} parent=1 // pred_region
      _
    $region25: #{c_net_forward.1} parent=1 // pred_fallthru
      _
    // Predicated region
    $region26: #{c_net_forward.1} parent=1 // pred_check
      _
    $region27: #{c_net_forward.1} parent=1 // pred_check_branch
      %57 = sbr.rel (0) target = $region29
    $region28: #{c_net_forward.1} parent=1 // pred_region
      _
    $region29: #{c_net_forward.1} parent=1 // pred_fallthru
      _
    // Predicated region
    $region30: #{c_net_forward.1} parent=1 // pred_check
      _
    $region31: #{c_net_forward.1} parent=1 // pred_check_branch
      %59 = sbr.rel (0) target = $region33
    $region32: #{c_net_forward.1} parent=1 // pred_region
      %60 = dma.done [#allocation4], 128
    $region33: #{c_net_forward.1} parent=1 // pred_fallthru
      _
    // Predicated region
    $region34: #{c_net_forward.1} parent=1 // pred_check
      _
    $region35: #{c_net_forward.1} parent=1 // pred_check_branch
      %62 = sbr.rel (0) target = $region37
    $region36: #{c_net_forward.1} parent=1 // pred_region
      %63 = dma.done [#allocation7], 256
    $region37: #{c_net_forward.1} parent=1 // pred_fallthru
      _
    // Predicated region
    $region38: #{c_net_forward.1} parent=1 // pred_check
      _
    $region39: #{c_net_forward.1} parent=1 // pred_check_branch
      %65 = sbr.rel (0) target = $region41
    $region40: #{c_net_forward.1} parent=1 // pred_region
      %66 = dma.done [#allocation7], 2048
    $region41: #{c_net_forward.1} parent=1 // pred_fallthru
      _
    %v67 = vld [vmem:[#allocation3] sm:$0xff]
    %v68 = vld [vmem:[#allocation6] sm:$0xff]
    %v69 = vld [vmem:[#allocation6 + $0x8] sm:$0xff]
    %v70 = vld [vmem:[%s2] sm:$0x1]
    %v72 = vlaneseq
    %v73 = vshrl.u32 %v72, 7
    %v74 = vsub.s32 0, %v73
    %v75 = vrot.slane %v70, %v74
    %vm77 = vcmask 130048
    %v79 = vsel %vm77, %v67, 0
    %81 = vmatprep.subr.mxu0 0.0
    %82 = vmatpush1.msra.mxu0 %v68
    %83 = vmatprep.subr.mxu0 0.0
    %84 = vmatpush1.msra.mxu0 %v69
    %85 = vmatprep.subr.mxu0 0.0
    %86 = vmatpush1.msra.mxu0 0.0
    %87 = vmatprep.subr.mxu0 0.0
    %88 = vmatpush1.msra.mxu0 0.0
    %89 = vmatprep.subr.mxu0 0.0
    %90 = vmatpush1.msra.mxu0 0.0
    %91 = vmatprep.subr.mxu0 0.0
    %92 = vmatpush1.msra.mxu0 0.0
    %93 = vmatprep.subr.mxu0 0.0
    %94 = vmatpush1.msra.mxu0 0.0
    %95 = vmatprep.subr.mxu0 0.0
    %96 = vmatpush1.msra.mxu0 0.0
    %97 = vmatprep.subr.mxu0 0.0
    %98 = vmatpush1.msra.mxu0 0.0
    %99 = vmatprep.subr.mxu0 0.0
    %100 = vmatpush1.msra.mxu0 0.0
    %101 = vmatprep.subr.mxu0 0.0
    %102 = vmatpush1.msra.mxu0 0.0
    %103 = vmatprep.subr.mxu0 0.0
    %104 = vmatpush1.msra.mxu0 0.0
    %105 = vmatprep.subr.mxu0 0.0
    %106 = vmatpush1.msra.mxu0 0.0
    %107 = vmatprep.subr.mxu0 0.0
    %108 = vmatpush1.msra.mxu0 0.0
    %109 = vmatprep.subr.mxu0 0.0
    %110 = vmatpush1.msra.mxu0 0.0
    %111 = vmatprep.subr.mxu0 0.0
    %112 = vmatpush1.msra.mxu0 0.0
    %113 = vmatprep.subr.mxu0 0.0
    %114 = vmatpush1.msra.mxu0 0.0
    %115 = vmatprep.subr.mxu0 0.0
    %116 = vmatpush1.msra.mxu0 0.0
    %117 = vmatprep.subr.mxu0 0.0
    %118 = vmatpush1.msra.mxu0 0.0
    %119 = vmatprep.subr.mxu0 0.0
    %120 = vmatpush1.msra.mxu0 0.0
    %121 = vmatprep.subr.mxu0 0.0
    %122 = vmatpush1.msra.mxu0 0.0
    %123 = vmatprep.subr.mxu0 0.0
    %124 = vmatpush1.msra.mxu0 0.0
    %125 = vmatprep.subr.mxu0 0.0
    %126 = vmatpush1.msra.mxu0 0.0
    %127 = vmatprep.subr.mxu0 0.0
    %128 = vmatpush1.msra.mxu0 0.0
    %129 = vmatprep.subr.mxu0 0.0
    %130 = vmatpush1.msra.mxu0 0.0
    %131 = vmatprep.subr.mxu0 0.0
    %132 = vmatpush1.msra.mxu0 0.0
    %133 = vmatprep.subr.mxu0 0.0
    %134 = vmatpush1.msra.mxu0 0.0
    %135 = vmatprep.subr.mxu0 0.0
    %136 = vmatpush1.msra.mxu0 0.0
    %137 = vmatprep.subr.mxu0 0.0
    %138 = vmatpush1.msra.mxu0 0.0
    %139 = vmatprep.subr.mxu0 0.0
    %140 = vmatpush1.msra.mxu0 0.0
    %141 = vmatprep.subr.mxu0 0.0
    %142 = vmatpush1.msra.mxu0 0.0
    %143 = vmatprep.subr.mxu0 0.0
    %144 = vmatpush1.msra.mxu0 0.0
    %145 = vmatprep.mubr.f32.mxu0 0.0
    %146 = vmatmul.mubr.f32.gmra.mrb[0].mxu0 %v79
    %v147 = vpop.f32.mrb[0].mxu0
    %v148 = vadd.f32 %v75, %v147
    %v149 = vpop.f32.mrb[0].mxu0
    %150 = vdwg.mxu0
    %v151 = vmax.f32 %v148, 0.0
    %v152 = vld [vmem:[#allocation8] sm:$0xff]
    %v153 = vld [vmem:[#allocation8 + $0x8] sm:$0xff]
    %v154 = vld [vmem:[#allocation8 + $0x10] sm:$0xff]
    %v155 = vld [vmem:[#allocation8 + $0x18] sm:$0xff]
    %v156 = vld [vmem:[#allocation8 + $0x20] sm:$0xff]
    %v157 = vld [vmem:[#allocation8 + $0x28] sm:$0xff]
    %v158 = vld [vmem:[#allocation8 + $0x30] sm:$0xff]
    %v159 = vld [vmem:[#allocation8 + $0x38] sm:$0xff]
    %v160 = vld [vmem:[#allocation8 + $0x40] sm:$0xff]
    %v161 = vld [vmem:[#allocation8 + $0x48] sm:$0xff]
    %v162 = vld [vmem:[#allocation8 + $0x50] sm:$0xff]
    %v163 = vld [vmem:[#allocation8 + $0x58] sm:$0xff]
    %v164 = vld [vmem:[#allocation8 + $0x60] sm:$0xff]
    %v165 = vld [vmem:[#allocation8 + $0x68] sm:$0xff]
    %v166 = vld [vmem:[#allocation8 + $0x70] sm:$0xff]
    %v167 = vld [vmem:[#allocation8 + $0x78] sm:$0xff]
    %v168 = vld [vmem:[%s4] sm:$0x1]
    %v170 = vlaneseq
    %v171 = vshrl.u32 %v170, 7
    %v172 = vsub.s32 0, %v171
    %v173 = vrot.slane %v168, %v172
    %175 = vmatprep.subr.mxu0 0.0
    %176 = vmatpush1.msra.mxu0 %v152
    %177 = vmatprep.subr.mxu0 0.0
    %178 = vmatpush1.msra.mxu0 %v153
    %179 = vmatprep.subr.mxu0 0.0
    %180 = vmatpush1.msra.mxu0 %v154
    %181 = vmatprep.subr.mxu0 0.0
    %182 = vmatpush1.msra.mxu0 %v155
    %183 = vmatprep.subr.mxu0 0.0
    %184 = vmatpush1.msra.mxu0 %v156
    %185 = vmatprep.subr.mxu0 0.0
    %186 = vmatpush1.msra.mxu0 %v157
    %187 = vmatprep.subr.mxu0 0.0
    %188 = vmatpush1.msra.mxu0 %v158
    %189 = vmatprep.subr.mxu0 0.0
    %190 = vmatpush1.msra.mxu0 %v159
    %191 = vmatprep.subr.mxu0 0.0
    %192 = vmatpush1.msra.mxu0 %v160
    %193 = vmatprep.subr.mxu0 0.0
    %194 = vmatpush1.msra.mxu0 %v161
    %195 = vmatprep.subr.mxu0 0.0
    %196 = vmatpush1.msra.mxu0 %v162
    %197 = vmatprep.subr.mxu0 0.0
    %198 = vmatpush1.msra.mxu0 %v163
    %199 = vmatprep.subr.mxu0 0.0
    %200 = vmatpush1.msra.mxu0 %v164
    %201 = vmatprep.subr.mxu0 0.0
    %202 = vmatpush1.msra.mxu0 %v165
    %203 = vmatprep.subr.mxu0 0.0
    %204 = vmatpush1.msra.mxu0 %v166
    %205 = vmatprep.subr.mxu0 0.0
    %206 = vmatpush1.msra.mxu0 %v167
    %207 = vmatprep.subr.mxu0 0.0
    %208 = vmatpush1.msra.mxu0 0.0
    %209 = vmatprep.subr.mxu0 0.0
    %210 = vmatpush1.msra.mxu0 0.0
    %211 = vmatprep.subr.mxu0 0.0
    %212 = vmatpush1.msra.mxu0 0.0
    %213 = vmatprep.subr.mxu0 0.0
    %214 = vmatpush1.msra.mxu0 0.0
    %215 = vmatprep.subr.mxu0 0.0
    %216 = vmatpush1.msra.mxu0 0.0
    %217 = vmatprep.subr.mxu0 0.0
    %218 = vmatpush1.msra.mxu0 0.0
    %219 = vmatprep.subr.mxu0 0.0
    %220 = vmatpush1.msra.mxu0 0.0
    %221 = vmatprep.subr.mxu0 0.0
    %222 = vmatpush1.msra.mxu0 0.0
    %223 = vmatprep.subr.mxu0 0.0
    %224 = vmatpush1.msra.mxu0 0.0
    %225 = vmatprep.subr.mxu0 0.0
    %226 = vmatpush1.msra.mxu0 0.0
    %227 = vmatprep.subr.mxu0 0.0
    %228 = vmatpush1.msra.mxu0 0.0
    %229 = vmatprep.subr.mxu0 0.0
    %230 = vmatpush1.msra.mxu0 0.0
    %231 = vmatprep.subr.mxu0 0.0
    %232 = vmatpush1.msra.mxu0 0.0
    %233 = vmatprep.subr.mxu0 0.0
    %234 = vmatpush1.msra.mxu0 0.0
    %235 = vmatprep.subr.mxu0 0.0
    %236 = vmatpush1.msra.mxu0 0.0
    %237 = vmatprep.subr.mxu0 0.0
    %238 = vmatpush1.msra.mxu0 0.0
    %239 = vmatprep.mubr.f32.mxu0 0.0
    %240 = vmatmul.mubr.f32.gmra.mrb[0].mxu0 %v151
    %v241 = vpop.f32.mrb[0].mxu0
    %v242 = vadd.f32 %v173, %v241
    %v243 = vpop.f32.mrb[0].mxu0
    %244 = vdwg.mxu0
    %v245 = vmax.f32 %v242, 0.0
    %v246 = vld [vmem:[%s5] sm:$0xff]
    %247 = vmatprep.subr.mxu0 0.0
    %248 = vmatpush1.xpose.msra.mxu0 %v245
    %249 = vmatprep.subr.mxu0 0.0
    %250 = vmatpush1.xpose.msra.mxu0 0.0
    %251 = vmatprep.subr.mxu0 0.0
    %252 = vmatpush1.xpose.msra.mxu0 0.0
    %253 = vmatprep.subr.mxu0 0.0
    %254 = vmatpush1.xpose.msra.mxu0 0.0
    %255 = vmatprep.subr.mxu0 0.0
    %256 = vmatpush1.xpose.msra.mxu0 0.0
    %257 = vmatprep.subr.mxu0 0.0
    %258 = vmatpush1.xpose.msra.mxu0 0.0
    %259 = vmatprep.subr.mxu0 0.0
    %260 = vmatpush1.xpose.msra.mxu0 0.0
    %261 = vmatprep.subr.mxu0 0.0
    %262 = vmatpush1.xpose.msra.mxu0 0.0
    %263 = vmatprep.subr.mxu0 0.0
    %264 = vmatpush1.xpose.msra.mxu0 0.0
    %265 = vmatprep.subr.mxu0 0.0
    %266 = vmatpush1.xpose.msra.mxu0 0.0
    %267 = vmatprep.subr.mxu0 0.0
    %268 = vmatpush1.xpose.msra.mxu0 0.0
    %269 = vmatprep.subr.mxu0 0.0
    %270 = vmatpush1.xpose.msra.mxu0 0.0
    %271 = vmatprep.subr.mxu0 0.0
    %272 = vmatpush1.xpose.msra.mxu0 0.0
    %273 = vmatprep.subr.mxu0 0.0
    %274 = vmatpush1.xpose.msra.mxu0 0.0
    %275 = vmatprep.subr.mxu0 0.0
    %276 = vmatpush1.xpose.msra.mxu0 0.0
    %277 = vmatprep.subr.mxu0 0.0
    %278 = vmatpush1.xpose.msra.mxu0 0.0
    %279 = vmatprep.subr.mxu0 0.0
    %280 = vmatpush1.xpose.msra.mxu0 0.0
    %281 = vmatprep.subr.mxu0 0.0
    %282 = vmatpush1.xpose.msra.mxu0 0.0
    %283 = vmatprep.subr.mxu0 0.0
    %284 = vmatpush1.xpose.msra.mxu0 0.0
    %285 = vmatprep.subr.mxu0 0.0
    %286 = vmatpush1.xpose.msra.mxu0 0.0
    %287 = vmatprep.subr.mxu0 0.0
    %288 = vmatpush1.xpose.msra.mxu0 0.0
    %289 = vmatprep.subr.mxu0 0.0
    %290 = vmatpush1.xpose.msra.mxu0 0.0
    %291 = vmatprep.subr.mxu0 0.0
    %292 = vmatpush1.xpose.msra.mxu0 0.0
    %293 = vmatprep.subr.mxu0 0.0
    %294 = vmatpush1.xpose.msra.mxu0 0.0
    %295 = vmatprep.subr.mxu0 0.0
    %296 = vmatpush1.xpose.msra.mxu0 0.0
    %297 = vmatprep.subr.mxu0 0.0
    %298 = vmatpush1.xpose.msra.mxu0 0.0
    %299 = vmatprep.subr.mxu0 0.0
    %300 = vmatpush1.xpose.msra.mxu0 0.0
    %301 = vmatprep.subr.mxu0 0.0
    %302 = vmatpush1.xpose.msra.mxu0 0.0
    %303 = vmatprep.subr.mxu0 0.0
    %304 = vmatpush1.xpose.msra.mxu0 0.0
    %305 = vmatprep.subr.mxu0 0.0
    %306 = vmatpush1.xpose.msra.mxu0 0.0
    %307 = vmatprep.subr.mxu0 0.0
    %308 = vmatpush1.xpose.msra.mxu0 0.0
    %309 = vmatprep.subr.mxu0 0.0
    %310 = vmatpush1.xpose.msra.mxu0 0.0
    %311 = vmatprep.mubr.f32.mxu0 0.0
    %312 = vmatmul.mubr.f32.gmra.mrb[0].mxu0 %v246
    %v313 = vpop.f32.mrb[0].mxu0
    %v314 = vadd.f32 0.0, %v313
    %v315 = vpop.f32.mrb[0].mxu0
    %316 = vdwg.mxu0
    %s317 = sld [smem:[#allocation2]]
    %v318 = vstv %s317
    %v319 = vadd.f32 %v314, %v318
    %vm320 = vcmask 57344
    %321 = vst.msk [vmem:[#allocation9] sm:$0x1] %vm320, %v319
    // Predicated region
    $region42: #{c_net_forward.1} parent=1 // pred_check
      _
    $region43: #{c_net_forward.1} parent=1 // pred_check_branch
      %323 = sbr.rel (0) target = $region45
    $region44: #{c_net_forward.1} parent=1 // pred_region
      %s325 = ssub.s32 16, 16
      %326 = vsyncadd [#allocation5], %s325
      %s328 = sshll.u32 [#allocation9], 4
      %s329 = int_to_ptr.vmem [resolvable:$true] %s328
      %331 = dma.vmem_to_hbm [thread:$0]  %s329, 16, %s7, [#allocation5]
    $region45: #{c_net_forward.1} parent=1 // pred_fallthru
      _
    // Predicated region
    $region46: #{c_net_forward.1} parent=1 // pred_check
      _
    $region47: #{c_net_forward.1} parent=1 // pred_check_branch
      %333 = sbr.rel (0) target = $region49
    $region48: #{c_net_forward.1} parent=1 // pred_region
      %334 = dma.done [#allocation5], 16
    $region49: #{c_net_forward.1} parent=1 // pred_fallthru
      _
    %335 = vsyncpa [#allocation4], 1
    %336 = vsyncpa [#allocation7], 1
    %337 = vsyncpa [#allocation5], 1

</llo_original>
